<compile_context>
chip_gen: v6e
topology: v6e:2x2x1
jax: 0.10.0
libtpu: 0.0.40
codegen_flags: <defaults>
</compile_context>

<pallas_src>
import functools

import jax
import jax.numpy as jnp
import numpy as np
from jax.experimental import pallas as pl
from jax.experimental.pallas import tpu as pltpu


# ----------------------------------------------------------------------------
# Pallas kernels
# ----------------------------------------------------------------------------
def _dense_kernel(z_ref, w_ref, o_ref):
    """Layer 0: (B, Cin) x (Cin, 16*C0) -> (B, 16*C0) (lane-dense output)."""
    o_ref[...] = jnp.dot(z_ref[...], w_ref[...], preferred_element_type=jnp.float32)


def _bn_relu_kernel(x_ref, g_ref, b_ref, o_ref, *, eps):
    """Training-mode BatchNorm (biased variance) + ReLU over (M, C)."""
    x = x_ref[...]
    mean = jnp.mean(x, axis=0, keepdims=True)
    var = jnp.mean((x - mean) * (x - mean), axis=0, keepdims=True)
    y = (x - mean) * jax.lax.rsqrt(var + eps) * g_ref[...] + b_ref[...]
    o_ref[...] = jnp.maximum(y, 0.0)


def _subpixel_bn_relu_kernel(xc_ref, w_ref, g_ref, b_ref, o_ref, *, B, H, W, C4, Cout, eps):
    """Fused 4-phase sub-pixel (stride-2) deconv + BatchNorm + ReLU.

    xc_ref : (B, H+1, W+1, 4*Cin)  2x2-window-folded (im2col) input
    w_ref  : (4, 4*Cin, Cout)      per-output-phase folded taps
    g_ref, b_ref : (1, Cout)
    o_ref  : (4, B*H*W, Cout)      phase-major output (pixel-shuffled by the wrapper)
    """
    M = B * H * W
    ssum = jnp.zeros((1, Cout), jnp.float32)
    ssq = jnp.zeros((1, Cout), jnp.float32)
    for p in range(4):
        ph, pw = p // 2, p % 2
        patch = xc_ref[:, ph:ph + H, pw:pw + W, :].reshape(M, C4)          # im2col view
        acc = jnp.dot(patch, w_ref[p], preferred_element_type=jnp.float32)  # MXU, K=4*Cin
        o_ref[p] = acc                                                      # park in VMEM
        ssum = ssum + jnp.sum(acc, axis=0, keepdims=True)
        ssq = ssq + jnp.sum(acc * acc, axis=0, keepdims=True)
    inv_n = 1.0 / (4.0 * M)
    mean = ssum * inv_n
    var = ssq * inv_n - mean * mean            # biased (training-mode) batch variance
    scale = g_ref[...] * jax.lax.rsqrt(var + eps)
    shift = b_ref[...] - mean * scale
    for p in range(4):
        o_ref[p] = jnp.maximum(o_ref[p] * scale + shift, 0.0)


def _subpixel_bias_tanh_kernel(xc_ref, w_ref, bias_ref, o_ref, *, B, H, W, C4, Cout):
    """Fused 4-phase sub-pixel (stride-2) deconv + bias + Tanh (final layer)."""
    M = B * H * W
    for p in range(4):
        ph, pw = p // 2, p % 2
        patch = xc_ref[:, ph:ph + H, pw:pw + W, :].reshape(M, C4)
        acc = jnp.dot(patch, w_ref[p], preferred_element_type=jnp.float32) + bias_ref[...]
        o_ref[p] = jnp.tanh(acc)


# ----------------------------------------------------------------------------
# Plain-JAX glue: weight re-arrangement, window folding, pixel shuffle
# ----------------------------------------------------------------------------
def dense_weight_from_torch(w_ct):
    """Torch ConvTranspose2d weight (Cin, Cout, 4, 4) applied to a 1x1 spatial input
    (stride 1, pad 0) == dense weight (Cin, 16*Cout), spatial-major / channel-minor."""
    cin, cout = w_ct.shape[0], w_ct.shape[1]
    return jnp.transpose(w_ct, (0, 2, 3, 1)).reshape(cin, 16 * cout)


def subpixel_weight_from_torch(w_ct):
    """Torch ConvTranspose2d weight (Cin, Cout, 4, 4), stride 2, pad 1 ->
    per-output-phase im2col weight (4, 4*Cin, Cout).

    y[2m+ph, 2n+pw] = sum_{dh,dw in {0,1}} xpad[m+ph+dh, n+pw+dw] . w_ct[:,:,3-ph-2dh,3-pw-2dw]
    where xpad is the (un-upsampled) input padded by 1 on each spatial side.
    """
    phases = []
    for ph in range(2):
        for pw in range(2):
            taps = []
            for dh in range(2):
                for dw in range(2):
                    taps.append(w_ct[:, :, 3 - ph - 2 * dh, 3 - pw - 2 * dw])  # (Cin, Cout)
            phases.append(jnp.concatenate(taps, axis=0))                       # (4*Cin, Cout)
    return jnp.stack(phases, axis=0)                                           # (4, 4*Cin, Cout)


def fold_2x2_windows(x_nhwc):
    """(B, H, W, C) -> (B, H+1, W+1, 4*C) im2col of all 2x2 windows of the 1-padded
    input, so every phase matmul in the kernel has a lane-dense K = 4*C."""
    B, H, W, C = x_nhwc.shape
    xp = jnp.pad(x_nhwc, ((0, 0), (1, 1), (1, 1), (0, 0)))
    parts = [xp[:, dh:dh + H + 1, dw:dw + W + 1, :] for dh in range(2) for dw in range(2)]
    return jnp.concatenate(parts, axis=-1)


def _interleave_phases(out_phase_major, B, H, W, Cout):
    """(4, B*H*W, Cout) phase-major output -> (B, 2H, 2W, Cout) pixel shuffle."""
    o = out_phase_major.reshape(2, 2, B, H, W, Cout)      # (ph, pw, b, h, w, c)
    o = jnp.transpose(o, (2, 3, 0, 4, 1, 5))              # (b, h, ph, w, pw, c)
    return o.reshape(B, 2 * H, 2 * W, Cout)


# ----------------------------------------------------------------------------
# pallas_call wrappers
# ----------------------------------------------------------------------------
_ARB1 = pltpu.CompilerParams(dimension_semantics=("arbitrary",))


def dense_pallas(z_2d, w_dense):
    B, Cin = z_2d.shape
    N = w_dense.shape[1]
    return pl.pallas_call(
        _dense_kernel,
        out_shape=jax.ShapeDtypeStruct((B, N), jnp.float32),
        grid=(1,),
        in_specs=[pl.BlockSpec((B, Cin), lambda i: (0, 0)),
                  pl.BlockSpec((Cin, N), lambda i: (0, 0))],
        out_specs=pl.BlockSpec((B, N), lambda i: (0, 0)),
        compiler_params=_ARB1,
    )(z_2d, w_dense)


def bn_relu_pallas(x_2d, gamma, beta, eps=1e-5):
    M, C = x_2d.shape
    return pl.pallas_call(
        functools.partial(_bn_relu_kernel, eps=eps),
        out_shape=jax.ShapeDtypeStruct((M, C), jnp.float32),
        grid=(1,),
        in_specs=[pl.BlockSpec((M, C), lambda i: (0, 0)),
                  pl.BlockSpec((1, C), lambda i: (0, 0)),
                  pl.BlockSpec((1, C), lambda i: (0, 0))],
        out_specs=pl.BlockSpec((M, C), lambda i: (0, 0)),
        compiler_params=_ARB1,
    )(x_2d, gamma.reshape(1, -1), beta.reshape(1, -1))


def subpixel_deconv_bn_relu_pallas(x_nhwc, w_phase, gamma, beta, eps=1e-5):
    B, H, W, Cin = x_nhwc.shape
    C4 = 4 * Cin
    Cout = w_phase.shape[-1]
    xc = fold_2x2_windows(x_nhwc)
    M = B * H * W
    out = pl.pallas_call(
        functools.partial(_subpixel_bn_relu_kernel, B=B, H=H, W=W, C4=C4, Cout=Cout, eps=eps),
        out_shape=jax.ShapeDtypeStruct((4, M, Cout), jnp.float32),
        grid=(1,),
        in_specs=[pl.BlockSpec((B, H + 1, W + 1, C4), lambda i: (0, 0, 0, 0)),
                  pl.BlockSpec((4, C4, Cout), lambda i: (0, 0, 0)),
                  pl.BlockSpec((1, Cout), lambda i: (0, 0)),
                  pl.BlockSpec((1, Cout), lambda i: (0, 0))],
        out_specs=pl.BlockSpec((4, M, Cout), lambda i: (0, 0, 0)),
        compiler_params=_ARB1,
    )(xc, w_phase, gamma.reshape(1, -1), beta.reshape(1, -1))
    return _interleave_phases(out, B, H, W, Cout)


def subpixel_deconv_bias_tanh_pallas(x_nhwc, w_phase, bias):
    B, H, W, Cin = x_nhwc.shape
    C4 = 4 * Cin
    Cout = w_phase.shape[-1]
    xc = fold_2x2_windows(x_nhwc)
    M = B * H * W
    out = pl.pallas_call(
        functools.partial(_subpixel_bias_tanh_kernel, B=B, H=H, W=W, C4=C4, Cout=Cout),
        out_shape=jax.ShapeDtypeStruct((4, M, Cout), jnp.float32),
        grid=(1,),
        in_specs=[pl.BlockSpec((B, H + 1, W + 1, C4), lambda i: (0, 0, 0, 0)),
                  pl.BlockSpec((4, C4, Cout), lambda i: (0, 0, 0)),
                  pl.BlockSpec((1, Cout), lambda i: (0, 0))],
        out_specs=pl.BlockSpec((4, M, Cout), lambda i: (0, 0, 0)),
        compiler_params=_ARB1,
    )(xc, w_phase, bias.reshape(1, -1))
    return _interleave_phases(out, B, H, W, Cout)


# ----------------------------------------------------------------------------
# Reference-path helpers (zero-insert + flipped-kernel VALID conv, XLA)
# ----------------------------------------------------------------------------
def torch_ct_weight_to_hwio(w_ct):
    """PyTorch ConvTranspose2d weight (Cin, Cout, KH, KW) -> equivalent VALID-conv
    weight in HWIO layout (KH, KW, Cin, Cout), spatially flipped."""
    return jnp.flip(w_ct, axis=(2, 3)).transpose(2, 3, 0, 1)


def conv_transpose_prepare_input(x_nhwc, stride, k, p):
    N, H, W, C = x_nhwc.shape
    if stride > 1:
        Hd, Wd = (H - 1) * stride + 1, (W - 1) * stride + 1
        up = jnp.zeros((N, Hd, Wd, C), x_nhwc.dtype)
        up = up.at[:, ::stride, ::stride, :].set(x_nhwc)
    else:
        up = x_nhwc
    pad = k - 1 - p
    return jnp.pad(up, ((0, 0), (pad, pad), (pad, pad), (0, 0)))


# ----------------------------------------------------------------------------
# ConvGenerator parameters + forward
# ----------------------------------------------------------------------------
def make_params(key, input_dim, output_channels, dim, n_upsamplings):
    d = min(dim * 2 ** (n_upsamplings - 1), dim * 16)
    cfgs = [(input_dim, d, 4, 1, 0)]  # (Cin, Cout, k, stride, pad)
    for i in range(n_upsamplings - 1):
        d_last = d
        d = min(dim * 2 ** (n_upsamplings - 2 - i), dim * 8)
        cfgs.append((d_last, d, 4, 2, 1))
    cfgs.append((d, output_channels, 4, 2, 1))  # BASELINE final ConvTranspose2d (has bias)

    params = []
    for li, (cin, cout, k, s, p) in enumerate(cfgs):
        key, kw_, kb_, kg_ = jax.random.split(key, 4)
        w_ct = 0.1 * jax.random.normal(kw_, (cin, cout, k, k), jnp.float32)  # torch layout
        is_last = li == len(cfgs) - 1
        lp = dict(k=k, s=s, p=p, last=is_last, w_hwio=torch_ct_weight_to_hwio(w_ct))
        if is_last:
            lp["bias"] = 0.1 * jax.random.normal(kb_, (cout,), jnp.float32)
            lp["w_phase"] = subpixel_weight_from_torch(w_ct)
            lp["gamma"] = lp["beta"] = None
        else:
            lp["bias"] = jnp.zeros((cout,), jnp.float32)  # ConvTranspose2d(bias=False)
            lp["gamma"] = 1.0 + 0.05 * jax.random.normal(kg_, (cout,), jnp.float32)
            lp["beta"] = 0.05 * jax.random.normal(kb_, (cout,), jnp.float32)
            if li == 0:
                lp["w_dense"] = dense_weight_from_torch(w_ct)
            else:
                lp["w_phase"] = subpixel_weight_from_torch(w_ct)
        params.append(lp)
    return params


def conv_generator_forward(z_nchw, params):
    """z_nchw: (B, input_dim, 1, 1) -> image (B, output_channels, H, W)."""
    B = z_nchw.shape[0]
    p0 = params[0]
    c0 = p0["gamma"].shape[0]
    # Layer 0: 1x1-spatial ConvTranspose == dense layer; then fused BN+ReLU kernel.
    z2d = z_nchw.reshape(B, -1).astype(jnp.float32)
    h = dense_pallas(z2d, p0["w_dense"])                       # (B, 16*C0) lane-dense
    h = bn_relu_pallas(h.reshape(B * 16, c0), p0["gamma"], p0["beta"])
    x = h.reshape(B, 4, 4, c0)                                 # NHWC
    # Stride-2 layers: fused sub-pixel deconv (+BN+ReLU, or +bias+tanh on the last).
    for lp in params[1:]:
        if lp["last"]:
            x = subpixel_deconv_bias_tanh_pallas(x, lp["w_phase"], lp["bias"])
        else:
            x = subpixel_deconv_bn_relu_pallas(x, lp["w_phase"], lp["gamma"], lp["beta"])
    return jnp.transpose(x, (0, 3, 1, 2))                      # NHWC -> NCHW


# Pure-JAX reference (same math, XLA convs) for correctness checking.
def conv_generator_ref(z_nchw, params):
    x = jnp.transpose(z_nchw, (0, 2, 3, 1)).astype(jnp.float32)
    dn = ("NHWC", "HWIO", "NHWC")
    for lp in params:
        xp = conv_transpose_prepare_input(x, lp["s"], lp["k"], lp["p"])
        x = jax.lax.conv_general_dilated(xp, lp["w_hwio"], (1, 1), "VALID",
                                         dimension_numbers=dn)
        x = x + lp["bias"]
        if lp["last"]:
            x = jnp.tanh(x)
        else:
            mean = jnp.mean(x, axis=(0, 1, 2), keepdims=True)
            var = jnp.mean((x - mean) ** 2, axis=(0, 1, 2), keepdims=True)
            x = (x - mean) * jax.lax.rsqrt(var + 1e-5) * lp["gamma"] + lp["beta"]
            x = jnp.maximum(x, 0.0)
    return jnp.transpose(x, (0, 3, 1, 2))


if __name__ == "__main__":
    # Small, module-consistent shapes: latent z is (B, input_dim, 1, 1).
    B, INPUT_DIM, OUT_CH, DIM, N_UP = 2, 32, 3, 8, 3

    key = jax.random.PRNGKey(0)
    kz, kp = jax.random.split(key)
    z = jax.random.normal(kz, (B, INPUT_DIM, 1, 1), jnp.float32)
    params = make_params(kp, INPUT_DIM, OUT_CH, DIM, N_UP)

    out = jax.block_until_ready(conv_generator_forward(z, params))
    ref = jax.block_until_ready(conv_generator_ref(z, params))

    assert out.shape == (B, OUT_CH, 1 << (N_UP + 2), 1 << (N_UP + 2)), out.shape
    err = float(np.max(np.abs(np.asarray(out) - np.asarray(ref))))
    assert np.allclose(np.asarray(out), np.asarray(ref), atol=1e-3, rtol=1e-3), err
    # TODO(synk): BatchNorm running_mean/var buffer updates (momentum tracking) are
    # state, not forward math, and are not reproduced here (training-mode batch
    # statistics are used, matching a freshly constructed nn.Module in train()).
    print("KERNEL_OK")
</pallas_src>

<mosaic_0001>
module attributes {stable_mosaic.version = 11 : i64} {
  func.func @_dense_kernel(%arg0: i32, %arg1: memref<2x32xf32, #tpu.memory_space<vmem>>, %arg2: memref<32x512xf32, #tpu.memory_space<vmem>>, %arg3: memref<2x512xf32, #tpu.memory_space<vmem>>) attributes {dimension_semantics = [#tpu.dimension_semantics<arbitrary>], iteration_bounds = array<i64: 1>, scalar_prefetch = 0 : i64, scratch_operands = 0 : i64, tpu.core_type = #tpu.core_type<tc>, window_params = [{pipeline_mode = #tpu.pipeline_mode<synchronous>, transform_indices = @transform_0, window_bounds = array<i64: 2, 32>}, {pipeline_mode = #tpu.pipeline_mode<synchronous>, transform_indices = @transform_1, window_bounds = array<i64: 32, 512>}, {pipeline_mode = #tpu.pipeline_mode<synchronous>, transform_indices = @transform_2, window_bounds = array<i64: 2, 512>}]} {
    %c0 = arith.constant 0 : index
    %c0_0 = arith.constant 0 : index
    %0 = vector.load %arg1[%c0, %c0_0] : memref<2x32xf32, #tpu.memory_space<vmem>>, vector<2x32xf32>
    %c0_1 = arith.constant 0 : index
    %c0_2 = arith.constant 0 : index
    %1 = vector.load %arg2[%c0_1, %c0_2] : memref<32x512xf32, #tpu.memory_space<vmem>>, vector<32x512xf32>
    %cst = arith.constant dense<0.000000e+00> : vector<2x512xf32>
    %2 = tpu.matmul %0, %1, %cst {dimension_numbers = #tpu.dot_dimension_numbers<[1], [0], [0], [1], [0, 0, 1, 1], [], []>} : vector<2x32xf32>, vector<32x512xf32>, vector<2x512xf32> -> vector<2x512xf32>
    %c0_3 = arith.constant 0 : index
    %c0_4 = arith.constant 0 : index
    %3 = vector.load %arg3[%c0_3, %c0_4] : memref<2x512xf32, #tpu.memory_space<vmem>>, vector<2x512xf32>
    tpu.vector_store %arg3[%c0_3, %c0_4], %2 {strides = array<i32>} : memref<2x512xf32, #tpu.memory_space<vmem>>, vector<2x512xf32>,
    return
  }
  func.func @transform_0(%arg0: i32) -> (i32, i32) {
    %c0_i32 = arith.constant 0 : i32
    %c0_i32_0 = arith.constant 0 : i32
    %c0_i32_1 = arith.constant 0 : i32
    return %c0_i32, %c0_i32_0 : i32, i32
  }
  func.func @transform_1(%arg0: i32) -> (i32, i32) {
    %c0_i32 = arith.constant 0 : i32
    %c0_i32_0 = arith.constant 0 : i32
    %c0_i32_1 = arith.constant 0 : i32
    return %c0_i32, %c0_i32_0 : i32, i32
  }
  func.func @transform_2(%arg0: i32) -> (i32, i32) {
    %c0_i32 = arith.constant 0 : i32
    %c0_i32_0 = arith.constant 0 : i32
    %c0_i32_1 = arith.constant 0 : i32
    return %c0_i32, %c0_i32_0 : i32, i32
  }
}

</mosaic_0001>

<llo_original>
// kernel: tpu_custom_call.1
$region0: #{tpu_custom_call.1}
  #allocation0 [shape = 'u32[]', space=smem, size = 0x4, offset = 0x4, fixed_abs, tag = 'smem constant byte address 0x4 - core index']
  #allocation1 [shape = 'u32[144,128]{1,0:T(1,128)}', space=vmem, size = 0x12000, scoped, tag = 'internal scratch']
  %s0 = inlined_call_operand.hbm [shape: f32[2,32], index: 0, kind: input, shape index: {}]
  %s1 = inlined_call_operand.hbm [shape: f32[32,512], index: 1, kind: input, shape index: {}]
  %s2 = inlined_call_operand.hbm [shape: f32[2,512], index: 2, kind: output, shape index: {}]
  %s3 = sld [smem:[#allocation0]]
  $region26: #{tpu_custom_call.1} parent=0
    _
  %s5 = ssub.s32 1, %s3
  %s6 = scalar_select 0, %s5, %s3
  $region1: #{tpu_custom_call.1} parent=0
    #allocation2 [shape = 'u8[1024]{0}', space=vmem, size = 0x400, scoped, tag = 'input window, operand 0, single buffered']
    #allocation3 [shape = 's32[1]{0}', space=sflag, size = 0x4, scoped, tag = 'scoped memory for tpu_custom_call.1']
    #allocation4 [shape = 's32[1]{0}', space=sflag, size = 0x4, scoped, tag = 'scoped memory for tpu_custom_call.1']
    #allocation5 [shape = 'u8[65536]{0}', space=vmem, size = 0x10000, scoped, tag = 'input window, operand 1, single buffered']
    #allocation6 [shape = 's32[1]{0}', space=sflag, size = 0x4, scoped, tag = 'scoped memory for tpu_custom_call.1']
    #allocation7 [shape = 'u8[4096]{0}', space=vmem, size = 0x1000, scoped, tag = 'output window, operand 0, single buffered']
    %7 = vsyncpa [#allocation3], 0
    %8 = vsyncpa [#allocation6], 0
    %9 = vsyncpa [#allocation4], 0
    // Predicated region
    $region2: #{tpu_custom_call.1} parent=1 // pred_check
      _
    $region3: #{tpu_custom_call.1} parent=1 // pred_check_branch
      %11 = sbr.rel (0) target = $region5
    $region4: #{tpu_custom_call.1} parent=1 // pred_region
      %s13 = ssub.s32 32, 32
      %14 = vsyncadd [#allocation3], %s13
      %s16 = sshll.u32 [#allocation2], 4
      %s17 = int_to_ptr.vmem [resolvable:$true] %s16
      %19 = dma.hbm_to_vmem [thread:$0]  %s0, 32, %s17, [#allocation3]
    $region5: #{tpu_custom_call.1} parent=1 // pred_fallthru
      _
    // Predicated region
    $region6: #{tpu_custom_call.1} parent=1 // pred_check
      _
    $region7: #{tpu_custom_call.1} parent=1 // pred_check_branch
      %21 = sbr.rel (0) target = $region9
    $region8: #{tpu_custom_call.1} parent=1 // pred_region
      %s23 = ssub.s32 2048, 2048
      %24 = vsyncadd [#allocation6], %s23
      %s25 = sshll.u32 [#allocation5], 4
      %s26 = int_to_ptr.vmem [resolvable:$true] %s25
      %31 = dma.hbm_to_vmem [thread:$0]  %s1, 2048, %s26, [#allocation6], 512, 512, 32
    $region9: #{tpu_custom_call.1} parent=1 // pred_fallthru
      _
    // Predicated region
    $region10: #{tpu_custom_call.1} parent=1 // pred_check
      _
    $region11: #{tpu_custom_call.1} parent=1 // pred_check_branch
      %33 = sbr.rel (0) target = $region13
    $region12: #{tpu_custom_call.1} parent=1 // pred_region
      %34 = dma.done [#allocation3], 32
    $region13: #{tpu_custom_call.1} parent=1 // pred_fallthru
      _
    // Predicated region
    $region14: #{tpu_custom_call.1} parent=1 // pred_check
      _
    $region15: #{tpu_custom_call.1} parent=1 // pred_check_branch
      %36 = sbr.rel (0) target = $region17
    $region16: #{tpu_custom_call.1} parent=1 // pred_region
      %37 = dma.done [#allocation6], 2048
    $region17: #{tpu_custom_call.1} parent=1 // pred_fallthru
      _
    %v38 = vld [vmem:[#allocation2] sm:$0x3]
    %v39 = vld [vmem:[#allocation5] sm:$0xff]
    %v40 = vld [vmem:[#allocation5 + $0x8] sm:$0xff]
    %v41 = vld [vmem:[#allocation5 + $0x10] sm:$0xff]
    %v42 = vld [vmem:[#allocation5 + $0x18] sm:$0xff]
    %v43 = vld [vmem:[#allocation5 + $0x20] sm:$0xff]
    %v44 = vld [vmem:[#allocation5 + $0x28] sm:$0xff]
    %v45 = vld [vmem:[#allocation5 + $0x30] sm:$0xff]
    %v46 = vld [vmem:[#allocation5 + $0x38] sm:$0xff]
    %v47 = vld [vmem:[#allocation5 + $0x40] sm:$0xff]
    %v48 = vld [vmem:[#allocation5 + $0x48] sm:$0xff]
    %v49 = vld [vmem:[#allocation5 + $0x50] sm:$0xff]
    %v50 = vld [vmem:[#allocation5 + $0x58] sm:$0xff]
    %v51 = vld [vmem:[#allocation5 + $0x60] sm:$0xff]
    %v52 = vld [vmem:[#allocation5 + $0x68] sm:$0xff]
    %v53 = vld [vmem:[#allocation5 + $0x70] sm:$0xff]
    %v54 = vld [vmem:[#allocation5 + $0x78] sm:$0xff]
    %vm55 = vcmask 261120
    %v57 = vsel %vm55, %v38, 0
    %59 = vmatprep.subr.mxu0 0.0
    %60 = vmatpush1.msra.mxu0 0.0
    %61 = vmatprep.subr.mxu0 0.0
    %62 = vmatpush1.msra.mxu0 0.0
    %63 = vmatprep.subr.mxu0 0.0
    %64 = vmatpush1.msra.mxu0 0.0
    %65 = vmatprep.subr.mxu0 0.0
    %66 = vmatpush1.msra.mxu0 0.0
    %67 = vmatprep.subr.mxu0 0.0
    %68 = vmatpush1.msra.mxu0 0.0
    %69 = vmatprep.subr.mxu0 0.0
    %70 = vmatpush1.msra.mxu0 0.0
    %71 = vmatprep.subr.mxu0 0.0
    %72 = vmatpush1.msra.mxu0 0.0
    %73 = vmatprep.subr.mxu0 0.0
    %74 = vmatpush1.msra.mxu0 0.0
    %75 = vmatprep.subr.mxu0 0.0
    %76 = vmatpush1.msra.mxu0 0.0
    %77 = vmatprep.subr.mxu0 0.0
    %78 = vmatpush1.msra.mxu0 0.0
    %79 = vmatprep.subr.mxu0 0.0
    %80 = vmatpush1.msra.mxu0 0.0
    %81 = vmatprep.subr.mxu0 0.0
    %82 = vmatpush1.msra.mxu0 0.0
    %83 = vmatprep.subr.mxu0 %v52
    %84 = vmatpush1.msra.mxu0 %v51
    %85 = vmatprep.subr.mxu0 %v48
    %86 = vmatpush1.msra.mxu0 %v47
    %87 = vmatprep.subr.mxu0 %v44
    %88 = vmatpush1.msra.mxu0 %v43
    %89 = vmatprep.subr.mxu0 %v40
    %90 = vmatpush1.msra.mxu0 %v39
    %91 = vmatprep.subr.mxu0 0.0
    %92 = vmatpush2.msra.mxu0 0.0
    %93 = vmatprep.subr.mxu0 0.0
    %94 = vmatpush2.msra.mxu0 0.0
    %95 = vmatprep.subr.mxu0 0.0
    %96 = vmatpush2.msra.mxu0 0.0
    %97 = vmatprep.subr.mxu0 0.0
    %98 = vmatpush2.msra.mxu0 0.0
    %99 = vmatprep.subr.mxu0 0.0
    %100 = vmatpush2.msra.mxu0 0.0
    %101 = vmatprep.subr.mxu0 0.0
    %102 = vmatpush2.msra.mxu0 0.0
    %103 = vmatprep.subr.mxu0 0.0
    %104 = vmatpush2.msra.mxu0 0.0
    %105 = vmatprep.subr.mxu0 0.0
    %106 = vmatpush2.msra.mxu0 0.0
    %107 = vmatprep.subr.mxu0 0.0
    %108 = vmatpush2.msra.mxu0 0.0
    %109 = vmatprep.subr.mxu0 0.0
    %110 = vmatpush2.msra.mxu0 0.0
    %111 = vmatprep.subr.mxu0 0.0
    %112 = vmatpush2.msra.mxu0 0.0
    %113 = vmatprep.subr.mxu0 0.0
    %114 = vmatpush2.msra.mxu0 0.0
    %115 = vmatprep.subr.mxu0 0.0
    %116 = vmatpush2.msra.mxu0 0.0
    %117 = vmatprep.subr.mxu0 0.0
    %118 = vmatpush2.msra.mxu0 0.0
    %119 = vmatprep.subr.mxu0 0.0
    %120 = vmatpush2.msra.mxu0 0.0
    %121 = vmatprep.subr.mxu0 0.0
    %122 = vmatpush2.msra.mxu0 0.0
    %123 = vmatprep.mubr.f32.mxu0 0.0
    %124 = vmatmul.mubr.f32.gmra.mxu0 %v57
    %v125 = vpop.f32.mrf.mxu0
    %v126 = vadd.f32 0.0, %v125
    %v127 = vpop.f32.mrf.mxu0
    %v128 = vadd.f32 0.0, %v127
    %129 = vdwg.mxu0
    %130 = vmatprep.subr.mxu0 0.0
    %131 = vmatpush1.msra.mxu0 0.0
    %132 = vmatprep.subr.mxu0 0.0
    %133 = vmatpush1.msra.mxu0 0.0
    %134 = vmatprep.subr.mxu0 0.0
    %135 = vmatpush1.msra.mxu0 0.0
    %136 = vmatprep.subr.mxu0 0.0
    %137 = vmatpush1.msra.mxu0 0.0
    %138 = vmatprep.subr.mxu0 0.0
    %139 = vmatpush1.msra.mxu0 0.0
    %140 = vmatprep.subr.mxu0 0.0
    %141 = vmatpush1.msra.mxu0 0.0
    %142 = vmatprep.subr.mxu0 0.0
    %143 = vmatpush1.msra.mxu0 0.0
    %144 = vmatprep.subr.mxu0 0.0
    %145 = vmatpush1.msra.mxu0 0.0
    %146 = vmatprep.subr.mxu0 0.0
    %147 = vmatpush1.msra.mxu0 0.0
    %148 = vmatprep.subr.mxu0 0.0
    %149 = vmatpush1.msra.mxu0 0.0
    %150 = vmatprep.subr.mxu0 0.0
    %151 = vmatpush1.msra.mxu0 0.0
    %152 = vmatprep.subr.mxu0 0.0
    %153 = vmatpush1.msra.mxu0 0.0
    %154 = vmatprep.subr.mxu0 %v54
    %155 = vmatpush1.msra.mxu0 %v53
    %156 = vmatprep.subr.mxu0 %v50
    %157 = vmatpush1.msra.mxu0 %v49
    %158 = vmatprep.subr.mxu0 %v46
    %159 = vmatpush1.msra.mxu0 %v45
    %160 = vmatprep.subr.mxu0 %v42
    %161 = vmatpush1.msra.mxu0 %v41
    %162 = vmatprep.subr.mxu0 0.0
    %163 = vmatpush2.msra.mxu0 0.0
    %164 = vmatprep.subr.mxu0 0.0
    %165 = vmatpush2.msra.mxu0 0.0
    %166 = vmatprep.subr.mxu0 0.0
    %167 = vmatpush2.msra.mxu0 0.0
    %168 = vmatprep.subr.mxu0 0.0
    %169 = vmatpush2.msra.mxu0 0.0
    %170 = vmatprep.subr.mxu0 0.0
    %171 = vmatpush2.msra.mxu0 0.0
    %172 = vmatprep.subr.mxu0 0.0
    %173 = vmatpush2.msra.mxu0 0.0
    %174 = vmatprep.subr.mxu0 0.0
    %175 = vmatpush2.msra.mxu0 0.0
    %176 = vmatprep.subr.mxu0 0.0
    %177 = vmatpush2.msra.mxu0 0.0
    %178 = vmatprep.subr.mxu0 0.0
    %179 = vmatpush2.msra.mxu0 0.0
    %180 = vmatprep.subr.mxu0 0.0
    %181 = vmatpush2.msra.mxu0 0.0
    %182 = vmatprep.subr.mxu0 0.0
    %183 = vmatpush2.msra.mxu0 0.0
    %184 = vmatprep.subr.mxu0 0.0
    %185 = vmatpush2.msra.mxu0 0.0
    %186 = vmatprep.subr.mxu0 0.0
    %187 = vmatpush2.msra.mxu0 0.0
    %188 = vmatprep.subr.mxu0 0.0
    %189 = vmatpush2.msra.mxu0 0.0
    %190 = vmatprep.subr.mxu0 0.0
    %191 = vmatpush2.msra.mxu0 0.0
    %192 = vmatprep.subr.mxu0 0.0
    %193 = vmatpush2.msra.mxu0 0.0
    %194 = vmatprep.mubr.f32.mxu0 0.0
    %195 = vmatmul.mubr.f32.gmra.mxu0 %v57
    %v196 = vpop.f32.mrf.mxu0
    %v197 = vadd.f32 0.0, %v196
    %v198 = vpop.f32.mrf.mxu0
    %v199 = vadd.f32 0.0, %v198
    %200 = vdwg.mxu0
    %v205 = vcombine.low %v126, %v128
    %v206 = vcombine.low %v197, %v199
    %v208 = vunpack.c.l.s4 1983009808
    %v209 = vunpack.c.0.s8 %v208
    %v210 = vlaneseq
    %v211 = vshrl.u32 %v210, 7
    %v212 = vsub.s32 %v209, %v211
    %v213 = vrot.slane %v205, %v212
    %v215 = vunpack.c.l.s4 1983009808
    %v216 = vunpack.c.0.s8 %v215
    %v217 = vlaneseq
    %v218 = vshrl.u32 %v217, 7
    %v219 = vsub.s32 %v216, %v218
    %v220 = vrot.slane %v206, %v219
    %v221 = vcombine.low %v213, %v220
    %223 = vst [vmem:[#allocation7] sm:$0xff] %v221
    // Predicated region
    $region18: #{tpu_custom_call.1} parent=1 // pred_check
      _
    $region19: #{tpu_custom_call.1} parent=1 // pred_check_branch
      %225 = sbr.rel (0) target = $region21
    $region20: #{tpu_custom_call.1} parent=1 // pred_region
      %s227 = ssub.s32 128, 128
      %228 = vsyncadd [#allocation4], %s227
      %s230 = sshll.u32 [#allocation7], 4
      %s231 = int_to_ptr.vmem [resolvable:$true] %s230
      %233 = dma.vmem_to_hbm [thread:$0]  %s231, 128, %s2, [#allocation4]
    $region21: #{tpu_custom_call.1} parent=1 // pred_fallthru
      _
    // Predicated region
    $region22: #{tpu_custom_call.1} parent=1 // pred_check
      _
    $region23: #{tpu_custom_call.1} parent=1 // pred_check_branch
      %235 = sbr.rel (0) target = $region25
    $region24: #{tpu_custom_call.1} parent=1 // pred_region
      %236 = dma.done [#allocation4], 128
    $region25: #{tpu_custom_call.1} parent=1 // pred_fallthru
      _
    %237 = vsyncpa [#allocation3], 1
    %238 = vsyncpa [#allocation6], 1
    %239 = vsyncpa [#allocation4], 1

</llo_original>
